<compile_context>
chip_gen: v7x
topology: tpu7x:2x2x1
jax: 0.10.0
libtpu: 0.0.40
codegen_flags: <defaults>
</compile_context>

<pallas_src>
import functools

import jax
import jax.numpy as jnp
from jax.experimental import pallas as pl
from jax.experimental.pallas import tpu as pltpu


def _round_up(x, m):
    return (x + m - 1) // m * m


def _block_kernel(x_ref, w1_ref, b1_ref, w2_ref, b2_ref, out_ref, *,
                  H, W, mxu_dtype):
    # x_ref  : (1, Cin_p, H*W)    float32   (channel-padded input, spatial flat)
    # w1_ref : (Cmid_p, 9*Cin_p)  mxu_dtype (im2col-packed conv1 weights)
    # b1_ref : (Cmid_p, 1)        float32
    # w2_ref : (Cmid_p, 9*Cmid_p) mxu_dtype (im2col-packed conv2 weights)
    # b2_ref : (Cmid_p, 1)        float32
    # out_ref: (1, Cmid_p, H*W)   float32
    HW = H * W

    # Flattened-position iota for the border masks (hoisted, reused by both
    # convs).  W is a power of two, so the column index is a bitwise AND --
    # no vector integer division on the VPU.
    pos = jax.lax.broadcasted_iota(jnp.int32, (1, HW), 1)
    col = jnp.bitwise_and(pos, W - 1)

    def im2col(a):
        """a: (C, HW) f32 -> (9*C, HW).  Row block k = ky*3+kx holds the
        zero-padded 3x3 neighbour (dy, dx) = (ky-1, kx-1) of `a`, matching the
        column order of the packed weights."""
        taps = []
        for dy in (-1, 0, 1):
            for dx in (-1, 0, 1):
                s = dy * W + dx                       # want tap[p] = a[p + s]
                t = a if s == 0 else pltpu.roll(a, shift=(-s) % HW, axis=1)
                conds = []
                if dy == -1:
                    conds.append(pos >= W)            # row >= 1
                elif dy == 1:
                    conds.append(pos < (H - 1) * W)   # row <= H-2
                if dx == -1:
                    conds.append(col >= 1)
                elif dx == 1:
                    conds.append(col <= W - 2)
                if conds:
                    valid = conds[0]
                    for c in conds[1:]:
                        valid = jnp.logical_and(valid, c)
                    t = jnp.where(valid, t, jnp.zeros_like(t))
                taps.append(t)
        # each tap is (C_p, HW) with C_p a multiple of 8 -> sublane-aligned
        return jnp.concatenate(taps, axis=0)

    # ---- conv1: single im2col matmul (K = 9*Cin_p), f32 accumulation ----
    p1 = im2col(x_ref[0]).astype(mxu_dtype)
    h = jnp.dot(w1_ref[...], p1, preferred_element_type=jnp.float32)
    h = jnp.maximum(h + b1_ref[...], 0.0)             # bias + ReLU in f32

    # ---- conv2: single im2col matmul (K = 9*Cmid_p) ----
    p2 = im2col(h).astype(mxu_dtype)
    out = jnp.dot(w2_ref[...], p2, preferred_element_type=jnp.float32)
    out_ref[0] = (out + b2_ref[...]).astype(out_ref.dtype)


def _pack_conv_weight(w, cin_p, cout_p, dtype):
    """torch OIHW (Cout, Cin, 3, 3) -> (cout_p, 9*cin_p); column index is
    (ky*3 + kx)*cin_p + cin, matching the kernel's im2col row order.  Padded
    rows/columns are zero."""
    cout, cin, kh, kw = w.shape
    wt = jnp.transpose(w, (0, 2, 3, 1))               # (Cout, kh, kw, Cin)
    wp = jnp.zeros((cout_p, kh, kw, cin_p), w.dtype)
    wp = wp.at[:cout, :, :, :cin].set(wt)
    return wp.reshape(cout_p, kh * kw * cin_p).astype(dtype)


def _pack_bias(b, c_p):
    return jnp.zeros((c_p, 1), jnp.float32).at[:b.shape[0], 0].set(
        b.astype(jnp.float32))


def block_forward(x_nchw, w1, b1, w2, b2, *, mxu_dtype=jnp.bfloat16):
    """x_nchw: (N, Cin, H, W); w1: (Cmid, Cin, 3, 3); w2: (Cmid, Cmid, 3, 3)."""
    N, Cin, H, W = x_nchw.shape
    Cmid = w1.shape[0]
    HW = H * W
    # TODO(synk): support non-power-of-two W (needs a general column-index
    # construction for the border masks instead of the bitwise AND).
    assert W & (W - 1) == 0, "this kernel assumes W is a power of two"

    Cin_p = _round_up(Cin, 8)         # sublane-aligned channel counts
    Cmid_p = _round_up(Cmid, 8)

    # NCHW -> (N, C, H*W) is a metadata-only reshape; only the (tiny) channel
    # zero-pad to a multiple of 8 materializes anything (no spatial halo pad,
    # no transpose in the wrapper).
    x_flat = x_nchw.reshape(N, Cin, HW).astype(jnp.float32)
    if Cin_p != Cin:
        x_flat = jnp.pad(x_flat, ((0, 0), (0, Cin_p - Cin), (0, 0)))

    w1p = _pack_conv_weight(w1, Cin_p, Cmid_p, mxu_dtype)
    w2p = _pack_conv_weight(w2, Cmid_p, Cmid_p, mxu_dtype)
    b1p = _pack_bias(b1, Cmid_p)
    b2p = _pack_bias(b2, Cmid_p)

    kernel = functools.partial(_block_kernel, H=H, W=W, mxu_dtype=mxu_dtype)

    out_flat = pl.pallas_call(
        kernel,
        out_shape=jax.ShapeDtypeStruct((N, Cmid_p, HW), jnp.float32),
        grid_spec=pltpu.PrefetchScalarGridSpec(
            num_scalar_prefetch=0,
            grid=(N,),
            in_specs=[
                pl.BlockSpec((1, Cin_p, HW), lambda n: (n, 0, 0)),
                pl.BlockSpec((Cmid_p, 9 * Cin_p), lambda n: (0, 0)),
                pl.BlockSpec((Cmid_p, 1), lambda n: (0, 0)),
                pl.BlockSpec((Cmid_p, 9 * Cmid_p), lambda n: (0, 0)),
                pl.BlockSpec((Cmid_p, 1), lambda n: (0, 0)),
            ],
            out_specs=pl.BlockSpec((1, Cmid_p, HW), lambda n: (n, 0, 0)),
        ),
        compiler_params=pltpu.CompilerParams(
            dimension_semantics=("parallel",)),
    )(x_flat, w1p, b1p, w2p, b2p)

    # (N, Cmid, H*W) -> NCHW; metadata-only reshape (output is already
    # channel-major, lane-dense).
    return out_flat[:, :Cmid, :].reshape(N, Cmid, H, W)


def _reference(x_nchw, w1, b1, w2, b2, compute_dtype=jnp.float32):
    """Pure-JAX reference (lax.conv, NCHW, same semantics as PyTorch).  With
    compute_dtype=bfloat16 it applies the same input/weight quantization as the
    kernel's MXU path (f32 accumulation)."""
    dn = jax.lax.conv_dimension_numbers(x_nchw.shape, w1.shape,
                                        ("NCHW", "OIHW", "NCHW"))
    h = jax.lax.conv_general_dilated(
        x_nchw.astype(compute_dtype), w1.astype(compute_dtype), (1, 1),
        ((1, 1), (1, 1)), dimension_numbers=dn,
        preferred_element_type=jnp.float32)
    h = jnp.maximum(h + b1[None, :, None, None], 0.0)
    o = jax.lax.conv_general_dilated(
        h.astype(compute_dtype), w2.astype(compute_dtype), (1, 1),
        ((1, 1), (1, 1)), dimension_numbers=dn,
        preferred_element_type=jnp.float32)
    return o + b2[None, :, None, None]


if __name__ == "__main__":
    # Small shapes consistent with the module: batch=2, inChannels=4,
    # outChannels=8, spatial 16x16.
    N, Cin, Cout, H, W = 2, 4, 8, 16, 16

    key = jax.random.PRNGKey(0)
    kx, kw1, kb1, kw2, kb2 = jax.random.split(key, 5)
    x = jax.random.normal(kx, (N, Cin, H, W), dtype=jnp.float32)
    w1 = jax.random.normal(kw1, (Cout, Cin, 3, 3), dtype=jnp.float32) * 0.1
    b1 = jax.random.normal(kb1, (Cout,), dtype=jnp.float32) * 0.1
    w2 = jax.random.normal(kw2, (Cout, Cout, 3, 3), dtype=jnp.float32) * 0.1
    b2 = jax.random.normal(kb2, (Cout,), dtype=jnp.float32) * 0.1

    out = jax.block_until_ready(block_forward(x, w1, b1, w2, b2))
    assert out.shape == (N, Cout, H, W), out.shape

    # Matched-quantization check: reference with the same bf16 rounding of
    # inputs/weights and f32 accumulation -> differences are reduction-order only.
    ref_q = jax.block_until_ready(
        _reference(x, w1, b1, w2, b2, compute_dtype=jnp.bfloat16))
    err_q = float(jnp.max(jnp.abs(out - ref_q)))
    assert err_q < 2e-3, f"mismatch vs bf16-quantized reference: {err_q}"

    # Loose sanity check against the full-f32 reference (bf16 rounding noise).
    ref_f = jax.block_until_ready(
        _reference(x, w1, b1, w2, b2, compute_dtype=jnp.float32))
    err_f = float(jnp.max(jnp.abs(out - ref_f)))
    assert err_f < 5e-2, f"mismatch vs f32 reference: {err_f}"

    print("KERNEL_OK")
</pallas_src>

<mosaic_0001>
module attributes {stable_mosaic.version = 11 : i64} {
  func.func @_block_kernel(%arg0: i32, %arg1: memref<1x8x256xf32, #tpu.memory_space<vmem>>, %arg2: memref<8x72xbf16, #tpu.memory_space<vmem>>, %arg3: memref<8x1xf32, #tpu.memory_space<vmem>>, %arg4: memref<8x72xbf16, #tpu.memory_space<vmem>>, %arg5: memref<8x1xf32, #tpu.memory_space<vmem>>, %arg6: memref<1x8x256xf32, #tpu.memory_space<vmem>>) attributes {dimension_semantics = [#tpu.dimension_semantics<parallel>], iteration_bounds = array<i64: 2>, scalar_prefetch = 0 : i64, scratch_operands = 0 : i64, tpu.core_type = #tpu.core_type<tc>, window_params = [{transform_indices = @transform_0, window_bounds = array<i64: 1, 8, 256>}, {pipeline_mode = #tpu.pipeline_mode<synchronous>, transform_indices = @transform_1, window_bounds = array<i64: 8, 72>}, {pipeline_mode = #tpu.pipeline_mode<synchronous>, transform_indices = @transform_2, window_bounds = array<i64: 8, 1>}, {pipeline_mode = #tpu.pipeline_mode<synchronous>, transform_indices = @transform_3, window_bounds = array<i64: 8, 72>}, {pipeline_mode = #tpu.pipeline_mode<synchronous>, transform_indices = @transform_4, window_bounds = array<i64: 8, 1>}, {transform_indices = @transform_5, window_bounds = array<i64: 1, 8, 256>}]} {
    %0 = tpu.iota {dimensions = array<i32: 1>} : vector<1x256xi32>
    %c15_i32 = arith.constant 15 : i32
    %1 = vector.broadcast %c15_i32 : i32 to vector<1x256xi32>
    %2 = arith.andi %0, %1 : vector<1x256xi32>
    %c0 = arith.constant 0 : index
    %c0_0 = arith.constant 0 : index
    %c0_1 = arith.constant 0 : index
    %3 = vector.load %arg1[%c0, %c0_0, %c0_1] : memref<1x8x256xf32, #tpu.memory_space<vmem>>, vector<1x8x256xf32>
    %4 = vector.shape_cast %3 : vector<1x8x256xf32> to vector<8x256xf32>
    %c17_i32 = arith.constant 17 : i32
    %5 = tpu.dynamic_rotate %4 by %c17_i32 dim 1 : vector<8x256xf32>, i32 -> vector<8x256xf32>
    %c16_i32 = arith.constant 16 : i32
    %6 = vector.broadcast %c16_i32 : i32 to vector<1x256xi32>
    %7 = arith.cmpi sge, %0, %6 : vector<1x256xi32>
    %c1_i32 = arith.constant 1 : i32
    %8 = vector.broadcast %c1_i32 : i32 to vector<1x256xi32>
    %9 = arith.cmpi sge, %2, %8 : vector<1x256xi32>
    %10 = arith.andi %7, %9 : vector<1x256xi1>
    %cst = arith.constant 0.000000e+00 : f32
    %11 = vector.broadcast %cst : f32 to vector<8x256xf32>
    %12 = vector.shape_cast %10 : vector<1x256xi1> to vector<1x256xi1>
    %13 = vector.broadcast %12 : vector<1x256xi1> to vector<8x256xi1>
    %14 = arith.select %13, %5, %11 : vector<8x256xi1>, vector<8x256xf32>
    %c16_i32_2 = arith.constant 16 : i32
    %15 = tpu.dynamic_rotate %4 by %c16_i32_2 dim 1 : vector<8x256xf32>, i32 -> vector<8x256xf32>
    %c16_i32_3 = arith.constant 16 : i32
    %16 = vector.broadcast %c16_i32_3 : i32 to vector<1x256xi32>
    %17 = arith.cmpi sge, %0, %16 : vector<1x256xi32>
    %cst_4 = arith.constant 0.000000e+00 : f32
    %18 = vector.broadcast %cst_4 : f32 to vector<8x256xf32>
    %19 = vector.shape_cast %17 : vector<1x256xi1> to vector<1x256xi1>
    %20 = vector.broadcast %19 : vector<1x256xi1> to vector<8x256xi1>
    %21 = arith.select %20, %15, %18 : vector<8x256xi1>, vector<8x256xf32>
    %c15_i32_5 = arith.constant 15 : i32
    %22 = tpu.dynamic_rotate %4 by %c15_i32_5 dim 1 : vector<8x256xf32>, i32 -> vector<8x256xf32>
    %c16_i32_6 = arith.constant 16 : i32
    %23 = vector.broadcast %c16_i32_6 : i32 to vector<1x256xi32>
    %24 = arith.cmpi sge, %0, %23 : vector<1x256xi32>
    %c14_i32 = arith.constant 14 : i32
    %25 = vector.broadcast %c14_i32 : i32 to vector<1x256xi32>
    %26 = arith.cmpi sle, %2, %25 : vector<1x256xi32>
    %27 = arith.andi %24, %26 : vector<1x256xi1>
    %cst_7 = arith.constant 0.000000e+00 : f32
    %28 = vector.broadcast %cst_7 : f32 to vector<8x256xf32>
    %29 = vector.shape_cast %27 : vector<1x256xi1> to vector<1x256xi1>
    %30 = vector.broadcast %29 : vector<1x256xi1> to vector<8x256xi1>
    %31 = arith.select %30, %22, %28 : vector<8x256xi1>, vector<8x256xf32>
    %c1_i32_8 = arith.constant 1 : i32
    %32 = tpu.dynamic_rotate %4 by %c1_i32_8 dim 1 : vector<8x256xf32>, i32 -> vector<8x256xf32>
    %c1_i32_9 = arith.constant 1 : i32
    %33 = vector.broadcast %c1_i32_9 : i32 to vector<1x256xi32>
    %34 = arith.cmpi sge, %2, %33 : vector<1x256xi32>
    %cst_10 = arith.constant 0.000000e+00 : f32
    %35 = vector.broadcast %cst_10 : f32 to vector<8x256xf32>
    %36 = vector.shape_cast %34 : vector<1x256xi1> to vector<1x256xi1>
    %37 = vector.broadcast %36 : vector<1x256xi1> to vector<8x256xi1>
    %38 = arith.select %37, %32, %35 : vector<8x256xi1>, vector<8x256xf32>
    %c255_i32 = arith.constant 255 : i32
    %39 = tpu.dynamic_rotate %4 by %c255_i32 dim 1 : vector<8x256xf32>, i32 -> vector<8x256xf32>
    %c14_i32_11 = arith.constant 14 : i32
    %40 = vector.broadcast %c14_i32_11 : i32 to vector<1x256xi32>
    %41 = arith.cmpi sle, %2, %40 : vector<1x256xi32>
    %cst_12 = arith.constant 0.000000e+00 : f32
    %42 = vector.broadcast %cst_12 : f32 to vector<8x256xf32>
    %43 = vector.shape_cast %41 : vector<1x256xi1> to vector<1x256xi1>
    %44 = vector.broadcast %43 : vector<1x256xi1> to vector<8x256xi1>
    %45 = arith.select %44, %39, %42 : vector<8x256xi1>, vector<8x256xf32>
    %c241_i32 = arith.constant 241 : i32
    %46 = tpu.dynamic_rotate %4 by %c241_i32 dim 1 : vector<8x256xf32>, i32 -> vector<8x256xf32>
    %c240_i32 = arith.constant 240 : i32
    %47 = vector.broadcast %c240_i32 : i32 to vector<1x256xi32>
    %48 = arith.cmpi slt, %0, %47 : vector<1x256xi32>
    %c1_i32_13 = arith.constant 1 : i32
    %49 = vector.broadcast %c1_i32_13 : i32 to vector<1x256xi32>
    %50 = arith.cmpi sge, %2, %49 : vector<1x256xi32>
    %51 = arith.andi %48, %50 : vector<1x256xi1>
    %cst_14 = arith.constant 0.000000e+00 : f32
    %52 = vector.broadcast %cst_14 : f32 to vector<8x256xf32>
    %53 = vector.shape_cast %51 : vector<1x256xi1> to vector<1x256xi1>
    %54 = vector.broadcast %53 : vector<1x256xi1> to vector<8x256xi1>
    %55 = arith.select %54, %46, %52 : vector<8x256xi1>, vector<8x256xf32>
    %c240_i32_15 = arith.constant 240 : i32
    %56 = tpu.dynamic_rotate %4 by %c240_i32_15 dim 1 : vector<8x256xf32>, i32 -> vector<8x256xf32>
    %c240_i32_16 = arith.constant 240 : i32
    %57 = vector.broadcast %c240_i32_16 : i32 to vector<1x256xi32>
    %58 = arith.cmpi slt, %0, %57 : vector<1x256xi32>
    %cst_17 = arith.constant 0.000000e+00 : f32
    %59 = vector.broadcast %cst_17 : f32 to vector<8x256xf32>
    %60 = vector.shape_cast %58 : vector<1x256xi1> to vector<1x256xi1>
    %61 = vector.broadcast %60 : vector<1x256xi1> to vector<8x256xi1>
    %62 = arith.select %61, %56, %59 : vector<8x256xi1>, vector<8x256xf32>
    %c239_i32 = arith.constant 239 : i32
    %63 = tpu.dynamic_rotate %4 by %c239_i32 dim 1 : vector<8x256xf32>, i32 -> vector<8x256xf32>
    %c240_i32_18 = arith.constant 240 : i32
    %64 = vector.broadcast %c240_i32_18 : i32 to vector<1x256xi32>
    %65 = arith.cmpi slt, %0, %64 : vector<1x256xi32>
    %c14_i32_19 = arith.constant 14 : i32
    %66 = vector.broadcast %c14_i32_19 : i32 to vector<1x256xi32>
    %67 = arith.cmpi sle, %2, %66 : vector<1x256xi32>
    %68 = arith.andi %65, %67 : vector<1x256xi1>
    %cst_20 = arith.constant 0.000000e+00 : f32
    %69 = vector.broadcast %cst_20 : f32 to vector<8x256xf32>
    %70 = vector.shape_cast %68 : vector<1x256xi1> to vector<1x256xi1>
    %71 = vector.broadcast %70 : vector<1x256xi1> to vector<8x256xi1>
    %72 = arith.select %71, %63, %69 : vector<8x256xi1>, vector<8x256xf32>
    %73 = tpu.concatenate %14, %21, %31, %38, %4, %45, %55, %62, %72 in 0 : vector<8x256xf32>, vector<8x256xf32>, vector<8x256xf32>, vector<8x256xf32>, vector<8x256xf32>, vector<8x256xf32>, vector<8x256xf32>, vector<8x256xf32>, vector<8x256xf32> -> vector<72x256xf32>
    %74 = arith.truncf %73 : vector<72x256xf32> to vector<72x256xbf16>
    %c0_21 = arith.constant 0 : index
    %c0_22 = arith.constant 0 : index
    %75 = vector.load %arg2[%c0_21, %c0_22] : memref<8x72xbf16, #tpu.memory_space<vmem>>, vector<8x72xbf16>
    %cst_23 = arith.constant dense<0.000000e+00> : vector<8x256xf32>
    %76 = tpu.matmul %75, %74, %cst_23 {dimension_numbers = #tpu.dot_dimension_numbers<[1], [0], [0], [1], [0, 0, 1, 1], [], []>} : vector<8x72xbf16>, vector<72x256xbf16>, vector<8x256xf32> -> vector<8x256xf32>
    %c0_24 = arith.constant 0 : index
    %c0_25 = arith.constant 0 : index
    %77 = vector.load %arg3[%c0_24, %c0_25] : memref<8x1xf32, #tpu.memory_space<vmem>>, vector<8x1xf32>
    %78 = vector.broadcast %77 : vector<8x1xf32> to vector<8x256xf32>
    %79 = arith.addf %76, %78 : vector<8x256xf32>
    %cst_26 = arith.constant 0.000000e+00 : f32
    %80 = vector.broadcast %cst_26 : f32 to vector<8x256xf32>
    %81 = arith.maximumf %79, %80 : vector<8x256xf32>
    %c17_i32_27 = arith.constant 17 : i32
    %82 = tpu.dynamic_rotate %81 by %c17_i32_27 dim 1 : vector<8x256xf32>, i32 -> vector<8x256xf32>
    %c16_i32_28 = arith.constant 16 : i32
    %83 = vector.broadcast %c16_i32_28 : i32 to vector<1x256xi32>
    %84 = arith.cmpi sge, %0, %83 : vector<1x256xi32>
    %c1_i32_29 = arith.constant 1 : i32
    %85 = vector.broadcast %c1_i32_29 : i32 to vector<1x256xi32>
    %86 = arith.cmpi sge, %2, %85 : vector<1x256xi32>
    %87 = arith.andi %84, %86 : vector<1x256xi1>
    %cst_30 = arith.constant 0.000000e+00 : f32
    %88 = vector.broadcast %cst_30 : f32 to vector<8x256xf32>
    %89 = vector.shape_cast %87 : vector<1x256xi1> to vector<1x256xi1>
    %90 = vector.broadcast %89 : vector<1x256xi1> to vector<8x256xi1>
    %91 = arith.select %90, %82, %88 : vector<8x256xi1>, vector<8x256xf32>
    %c16_i32_31 = arith.constant 16 : i32
    %92 = tpu.dynamic_rotate %81 by %c16_i32_31 dim 1 : vector<8x256xf32>, i32 -> vector<8x256xf32>
    %c16_i32_32 = arith.constant 16 : i32
    %93 = vector.broadcast %c16_i32_32 : i32 to vector<1x256xi32>
    %94 = arith.cmpi sge, %0, %93 : vector<1x256xi32>
    %cst_33 = arith.constant 0.000000e+00 : f32
    %95 = vector.broadcast %cst_33 : f32 to vector<8x256xf32>
    %96 = vector.shape_cast %94 : vector<1x256xi1> to vector<1x256xi1>
    %97 = vector.broadcast %96 : vector<1x256xi1> to vector<8x256xi1>
    %98 = arith.select %97, %92, %95 : vector<8x256xi1>, vector<8x256xf32>
    %c15_i32_34 = arith.constant 15 : i32
    %99 = tpu.dynamic_rotate %81 by %c15_i32_34 dim 1 : vector<8x256xf32>, i32 -> vector<8x256xf32>
    %c16_i32_35 = arith.constant 16 : i32
    %100 = vector.broadcast %c16_i32_35 : i32 to vector<1x256xi32>
    %101 = arith.cmpi sge, %0, %100 : vector<1x256xi32>
    %c14_i32_36 = arith.constant 14 : i32
    %102 = vector.broadcast %c14_i32_36 : i32 to vector<1x256xi32>
    %103 = arith.cmpi sle, %2, %102 : vector<1x256xi32>
    %104 = arith.andi %101, %103 : vector<1x256xi1>
    %cst_37 = arith.constant 0.000000e+00 : f32
    %105 = vector.broadcast %cst_37 : f32 to vector<8x256xf32>
    %106 = vector.shape_cast %104 : vector<1x256xi1> to vector<1x256xi1>
    %107 = vector.broadcast %106 : vector<1x256xi1> to vector<8x256xi1>
    %108 = arith.select %107, %99, %105 : vector<8x256xi1>, vector<8x256xf32>
    %c1_i32_38 = arith.constant 1 : i32
    %109 = tpu.dynamic_rotate %81 by %c1_i32_38 dim 1 : vector<8x256xf32>, i32 -> vector<8x256xf32>
    %c1_i32_39 = arith.constant 1 : i32
    %110 = vector.broadcast %c1_i32_39 : i32 to vector<1x256xi32>
    %111 = arith.cmpi sge, %2, %110 : vector<1x256xi32>
    %cst_40 = arith.constant 0.000000e+00 : f32
    %112 = vector.broadcast %cst_40 : f32 to vector<8x256xf32>
    %113 = vector.shape_cast %111 : vector<1x256xi1> to vector<1x256xi1>
    %114 = vector.broadcast %113 : vector<1x256xi1> to vector<8x256xi1>
    %115 = arith.select %114, %109, %112 : vector<8x256xi1>, vector<8x256xf32>
    %c255_i32_41 = arith.constant 255 : i32
    %116 = tpu.dynamic_rotate %81 by %c255_i32_41 dim 1 : vector<8x256xf32>, i32 -> vector<8x256xf32>
    %c14_i32_42 = arith.constant 14 : i32
    %117 = vector.broadcast %c14_i32_42 : i32 to vector<1x256xi32>
    %118 = arith.cmpi sle, %2, %117 : vector<1x256xi32>
    %cst_43 = arith.constant 0.000000e+00 : f32
    %119 = vector.broadcast %cst_43 : f32 to vector<8x256xf32>
    %120 = vector.shape_cast %118 : vector<1x256xi1> to vector<1x256xi1>
    %121 = vector.broadcast %120 : vector<1x256xi1> to vector<8x256xi1>
    %122 = arith.select %121, %116, %119 : vector<8x256xi1>, vector<8x256xf32>
    %c241_i32_44 = arith.constant 241 : i32
    %123 = tpu.dynamic_rotate %81 by %c241_i32_44 dim 1 : vector<8x256xf32>, i32 -> vector<8x256xf32>
    %c240_i32_45 = arith.constant 240 : i32
    %124 = vector.broadcast %c240_i32_45 : i32 to vector<1x256xi32>
    %125 = arith.cmpi slt, %0, %124 : vector<1x256xi32>
    %c1_i32_46 = arith.constant 1 : i32
    %126 = vector.broadcast %c1_i32_46 : i32 to vector<1x256xi32>
    %127 = arith.cmpi sge, %2, %126 : vector<1x256xi32>
    %128 = arith.andi %125, %127 : vector<1x256xi1>
    %cst_47 = arith.constant 0.000000e+00 : f32
    %129 = vector.broadcast %cst_47 : f32 to vector<8x256xf32>
    %130 = vector.shape_cast %128 : vector<1x256xi1> to vector<1x256xi1>
    %131 = vector.broadcast %130 : vector<1x256xi1> to vector<8x256xi1>
    %132 = arith.select %131, %123, %129 : vector<8x256xi1>, vector<8x256xf32>
    %c240_i32_48 = arith.constant 240 : i32
    %133 = tpu.dynamic_rotate %81 by %c240_i32_48 dim 1 : vector<8x256xf32>, i32 -> vector<8x256xf32>
    %c240_i32_49 = arith.constant 240 : i32
    %134 = vector.broadcast %c240_i32_49 : i32 to vector<1x256xi32>
    %135 = arith.cmpi slt, %0, %134 : vector<1x256xi32>
    %cst_50 = arith.constant 0.000000e+00 : f32
    %136 = vector.broadcast %cst_50 : f32 to vector<8x256xf32>
    %137 = vector.shape_cast %135 : vector<1x256xi1> to vector<1x256xi1>
    %138 = vector.broadcast %137 : vector<1x256xi1> to vector<8x256xi1>
    %139 = arith.select %138, %133, %136 : vector<8x256xi1>, vector<8x256xf32>
    %c239_i32_51 = arith.constant 239 : i32
    %140 = tpu.dynamic_rotate %81 by %c239_i32_51 dim 1 : vector<8x256xf32>, i32 -> vector<8x256xf32>
    %c240_i32_52 = arith.constant 240 : i32
    %141 = vector.broadcast %c240_i32_52 : i32 to vector<1x256xi32>
    %142 = arith.cmpi slt, %0, %141 : vector<1x256xi32>
    %c14_i32_53 = arith.constant 14 : i32
    %143 = vector.broadcast %c14_i32_53 : i32 to vector<1x256xi32>
    %144 = arith.cmpi sle, %2, %143 : vector<1x256xi32>
    %145 = arith.andi %142, %144 : vector<1x256xi1>
    %cst_54 = arith.constant 0.000000e+00 : f32
    %146 = vector.broadcast %cst_54 : f32 to vector<8x256xf32>
    %147 = vector.shape_cast %145 : vector<1x256xi1> to vector<1x256xi1>
    %148 = vector.broadcast %147 : vector<1x256xi1> to vector<8x256xi1>
    %149 = arith.select %148, %140, %146 : vector<8x256xi1>, vector<8x256xf32>
    %150 = tpu.concatenate %91, %98, %108, %115, %81, %122, %132, %139, %149 in 0 : vector<8x256xf32>, vector<8x256xf32>, vector<8x256xf32>, vector<8x256xf32>, vector<8x256xf32>, vector<8x256xf32>, vector<8x256xf32>, vector<8x256xf32>, vector<8x256xf32> -> vector<72x256xf32>
    %151 = arith.truncf %150 : vector<72x256xf32> to vector<72x256xbf16>
    %c0_55 = arith.constant 0 : index
    %c0_56 = arith.constant 0 : index
    %152 = vector.load %arg4[%c0_55, %c0_56] : memref<8x72xbf16, #tpu.memory_space<vmem>>, vector<8x72xbf16>
    %cst_57 = arith.constant dense<0.000000e+00> : vector<8x256xf32>
    %153 = tpu.matmul %152, %151, %cst_57 {dimension_numbers = #tpu.dot_dimension_numbers<[1], [0], [0], [1], [0, 0, 1, 1], [], []>} : vector<8x72xbf16>, vector<72x256xbf16>, vector<8x256xf32> -> vector<8x256xf32>
    %c0_58 = arith.constant 0 : index
    %c0_59 = arith.constant 0 : index
    %154 = vector.load %arg5[%c0_58, %c0_59] : memref<8x1xf32, #tpu.memory_space<vmem>>, vector<8x1xf32>
    %155 = vector.broadcast %154 : vector<8x1xf32> to vector<8x256xf32>
    %156 = arith.addf %153, %155 : vector<8x256xf32>
    %c0_60 = arith.constant 0 : index
    %c0_61 = arith.constant 0 : index
    %c0_62 = arith.constant 0 : index
    %157 = vector.load %arg6[%c0_60, %c0_61, %c0_62] : memref<1x8x256xf32, #tpu.memory_space<vmem>>, vector<1x8x256xf32>
    %158 = vector.shape_cast %157 : vector<1x8x256xf32> to vector<8x256xf32>
    %159 = vector.shape_cast %156 : vector<8x256xf32> to vector<1x8x256xf32>
    tpu.vector_store %arg6[%c0_60, %c0_61, %c0_62], %159 {strides = array<i32>} : memref<1x8x256xf32, #tpu.memory_space<vmem>>, vector<1x8x256xf32>,
    return
  }
  func.func @transform_0(%arg0: i32) -> (i32, i32, i32) {
    %c0_i32 = arith.constant 0 : i32
    %c0_i32_0 = arith.constant 0 : i32
    %c0_i32_1 = arith.constant 0 : i32
    return %arg0, %c0_i32, %c0_i32_0 : i32, i32, i32
  }
  func.func @transform_1(%arg0: i32) -> (i32, i32) {
    %c0_i32 = arith.constant 0 : i32
    %c0_i32_0 = arith.constant 0 : i32
    %c0_i32_1 = arith.constant 0 : i32
    return %c0_i32, %c0_i32_0 : i32, i32
  }
  func.func @transform_2(%arg0: i32) -> (i32, i32) {
    %c0_i32 = arith.constant 0 : i32
    %c0_i32_0 = arith.constant 0 : i32
    %c0_i32_1 = arith.constant 0 : i32
    return %c0_i32, %c0_i32_0 : i32, i32
  }
  func.func @transform_3(%arg0: i32) -> (i32, i32) {
    %c0_i32 = arith.constant 0 : i32
    %c0_i32_0 = arith.constant 0 : i32
    %c0_i32_1 = arith.constant 0 : i32
    return %c0_i32, %c0_i32_0 : i32, i32
  }
  func.func @transform_4(%arg0: i32) -> (i32, i32) {
    %c0_i32 = arith.constant 0 : i32
    %c0_i32_0 = arith.constant 0 : i32
    %c0_i32_1 = arith.constant 0 : i32
    return %c0_i32, %c0_i32_0 : i32, i32
  }
  func.func @transform_5(%arg0: i32) -> (i32, i32, i32) {
    %c0_i32 = arith.constant 0 : i32
    %c0_i32_0 = arith.constant 0 : i32
    %c0_i32_1 = arith.constant 0 : i32
    return %arg0, %c0_i32, %c0_i32_0 : i32, i32, i32
  }
}

</mosaic_0001>

<llo_original>
// kernel: tpu_custom_call.1
$region0: #{tpu_custom_call.1}
  #allocation0 [shape = 'u32[]', space=smem, size = 0x4, offset = 0x4, fixed_abs, tag = 'smem constant byte address 0x4 - core index']
  #allocation1 [shape = 'u32[144,128]{1,0:T(1,128)}', space=vmem, size = 0x12000, scoped, tag = 'internal scratch']
  %s0 = inlined_call_operand.hbm [shape: f32[2,8,256], index: 0, kind: input, shape index: {}]
  %s1 = inlined_call_operand.vmem [shape: bf16[8,72], index: 1, kind: input, shape index: {}]
  %s2 = inlined_call_operand.vmem [shape: f32[8,1], index: 2, kind: input, shape index: {}]
  %s3 = inlined_call_operand.vmem [shape: bf16[8,72], index: 3, kind: input, shape index: {}]
  %s4 = inlined_call_operand.vmem [shape: f32[8,1], index: 4, kind: input, shape index: {}]
  %s5 = inlined_call_operand.hbm [shape: f32[2,8,256], index: 5, kind: output, shape index: {}]
  %s6 = sld [smem:[#allocation0]]
  $region57: #{tpu_custom_call.1} parent=0
    _
  %s8 = ssub.s32 1, %s6
  %s9 = scalar_select 0, %s8, %s6
  $region1: #{tpu_custom_call.1} parent=0
    #allocation2 [shape = 'u8[16384]{0}', space=vmem, size = 0x4000, scoped, tag = 'input window, operand 0']
    #allocation3 [shape = 's32[2]{0}', space=sflag, size = 0x8, scoped, tag = 'scoped memory for tpu_custom_call.1']
    #allocation4 [shape = 's32[2]{0}', space=sflag, size = 0x8, scoped, tag = 'scoped memory for tpu_custom_call.1']
    #allocation5 [shape = 'u8[16384]{0}', space=vmem, size = 0x4000, scoped, tag = 'output window, operand 0']
    %10 = vsyncpa [#allocation3], 0
    %s11 = scalar_lea.sflag [#allocation3], 1
    %12 = vsyncpa %s11, 0
    %13 = vsyncpa [#allocation4], 0
    %s14 = scalar_lea.sflag [#allocation4], 1
    %15 = vsyncpa %s14, 0
    loop: start=0, step=1, limit=4
    $region2: #{tpu_custom_call.1} parent=1 // loop_pre_header
      _
    $region3: #{tpu_custom_call.1} parent=1 // loop_header
      %s17 = sphi 0, %s21
      %p18 = scmp.ge.s32.totalorder %s17, 4
      %s27 = sphi 0, %s29
      %s30 = sphi 0, %s27
      %s31 = sphi 0, %s30
      %s47 = sphi 0, %s31
      %s51 = sphi 0, %s51
      %s53 = sphi 0, %s51
      %s54 = sphi 0, %s53
      %s68 = sphi 0, %s54
      %s72 = sphi 0, %s72
      %s74 = sphi 0, %s72
      %s75 = sphi 0, %s74
      %s89 = sphi 0, %s75
      %s93 = sphi 0, %s93
      %s95 = sphi 0, %s93
      %s96 = sphi 0, %s95
      %s110 = sphi 0, %s96
      %s114 = sphi 0, %s114
      %s116 = sphi 0, %s114
      %s117 = sphi 0, %s116
      %s131 = sphi 0, %s117
      %s137 = sphi 0, %s139
      %s140 = sphi 0, %s137
      %s141 = sphi 0, %s140
      %s157 = sphi 0, %s141
    $region4: #{tpu_custom_call.1} parent=1 // loop_header_branch
      %20 = sbr.rel (%p18) target = $region8
    $region5: #{tpu_custom_call.1} parent=1 // loop_body
      %s22 = ssub.s32 %s17, 1
      %s23 = ssub.s32 %s17, 2
      %s24 = sadd.s32 %s17, 1
      %s25 = ssub.s32 %s17, %s24
      %p26 = scmp.eq.s32.totalorder %s25, 0
      %s28 = sadd.s32 %s27, 1
      %s29 = scalar_select %p26, %s27, %s28
      %p32 = pneg %p26
      %p33 = scmp.eq.s32.totalorder %s17, 1
      %p34 = por %p32, %p33
      %p35 = scmp.ne.s32.totalorder %s27, %s30
      %p36 = scmp.eq.s32.totalorder %s17, 0
      %p37 = por %p35, %p36
      %p38 = scmp.ne.s32.totalorder %s27, %s30
      %p39 = scmp.eq.s32.totalorder %s22, 1
      %p40 = por %p38, %p39
      %p41 = scmp.ne.s32.totalorder %s30, %s31
      %p42 = scmp.eq.s32.totalorder %s22, 0
      %p43 = por %p41, %p42
      %p44 = scmp.ne.s32.totalorder %s30, %s31
      %p45 = scmp.eq.s32.totalorder %s23, 1
      %p46 = por %p44, %p45
      %p48 = scmp.ne.s32.totalorder %s31, %s47
      %p49 = scmp.eq.s32.totalorder %s23, 0
      %p50 = por %p48, %p49
      %s52 = sadd.s32 %s51, 1
      %p55 = scmp.eq.s32.totalorder %s17, 1
      %p56 = scmp.ne.s32.totalorder %s51, %s53
      %p57 = scmp.eq.s32.totalorder %s17, 0
      %p58 = por %p56, %p57
      %p59 = scmp.ne.s32.totalorder %s51, %s53
      %p60 = scmp.eq.s32.totalorder %s22, 1
      %p61 = por %p59, %p60
      %p62 = scmp.ne.s32.totalorder %s53, %s54
      %p63 = scmp.eq.s32.totalorder %s22, 0
      %p64 = por %p62, %p63
      %p65 = scmp.ne.s32.totalorder %s53, %s54
      %p66 = scmp.eq.s32.totalorder %s23, 1
      %p67 = por %p65, %p66
      %p69 = scmp.ne.s32.totalorder %s54, %s68
      %p70 = scmp.eq.s32.totalorder %s23, 0
      %p71 = por %p69, %p70
      %s73 = sadd.s32 %s72, 1
      %p76 = scmp.eq.s32.totalorder %s17, 1
      %p77 = scmp.ne.s32.totalorder %s72, %s74
      %p78 = scmp.eq.s32.totalorder %s17, 0
      %p79 = por %p77, %p78
      %p80 = scmp.ne.s32.totalorder %s72, %s74
      %p81 = scmp.eq.s32.totalorder %s22, 1
      %p82 = por %p80, %p81
      %p83 = scmp.ne.s32.totalorder %s74, %s75
      %p84 = scmp.eq.s32.totalorder %s22, 0
      %p85 = por %p83, %p84
      %p86 = scmp.ne.s32.totalorder %s74, %s75
      %p87 = scmp.eq.s32.totalorder %s23, 1
      %p88 = por %p86, %p87
      %p90 = scmp.ne.s32.totalorder %s75, %s89
      %p91 = scmp.eq.s32.totalorder %s23, 0
      %p92 = por %p90, %p91
      %s94 = sadd.s32 %s93, 1
      %p97 = scmp.eq.s32.totalorder %s17, 1
      %p98 = scmp.ne.s32.totalorder %s93, %s95
      %p99 = scmp.eq.s32.totalorder %s17, 0
      %p100 = por %p98, %p99
      %p101 = scmp.ne.s32.totalorder %s93, %s95
      %p102 = scmp.eq.s32.totalorder %s22, 1
      %p103 = por %p101, %p102
      %p104 = scmp.ne.s32.totalorder %s95, %s96
      %p105 = scmp.eq.s32.totalorder %s22, 0
      %p106 = por %p104, %p105
      %p107 = scmp.ne.s32.totalorder %s95, %s96
      %p108 = scmp.eq.s32.totalorder %s23, 1
      %p109 = por %p107, %p108
      %p111 = scmp.ne.s32.totalorder %s96, %s110
      %p112 = scmp.eq.s32.totalorder %s23, 0
      %p113 = por %p111, %p112
      %s115 = sadd.s32 %s114, 1
      %p118 = scmp.eq.s32.totalorder %s17, 1
      %p119 = scmp.ne.s32.totalorder %s114, %s116
      %p120 = scmp.eq.s32.totalorder %s17, 0
      %p121 = por %p119, %p120
      %p122 = scmp.ne.s32.totalorder %s114, %s116
      %p123 = scmp.eq.s32.totalorder %s22, 1
      %p124 = por %p122, %p123
      %p125 = scmp.ne.s32.totalorder %s116, %s117
      %p126 = scmp.eq.s32.totalorder %s22, 0
      %p127 = por %p125, %p126
      %p128 = scmp.ne.s32.totalorder %s116, %s117
      %p129 = scmp.eq.s32.totalorder %s23, 1
      %p130 = por %p128, %p129
      %p132 = scmp.ne.s32.totalorder %s117, %s131
      %p133 = scmp.eq.s32.totalorder %s23, 0
      %p134 = por %p132, %p133
      %s135 = ssub.s32 %s17, %s24
      %p136 = scmp.eq.s32.totalorder %s135, 0
      %s138 = sadd.s32 %s137, 1
      %s139 = scalar_select %p136, %s137, %s138
      %p142 = pneg %p136
      %p143 = scmp.eq.s32.totalorder %s17, 1
      %p144 = por %p142, %p143
      %p145 = scmp.ne.s32.totalorder %s137, %s140
      %p146 = scmp.eq.s32.totalorder %s17, 0
      %p147 = por %p145, %p146
      %p148 = scmp.ne.s32.totalorder %s137, %s140
      %p149 = scmp.eq.s32.totalorder %s22, 1
      %p150 = por %p148, %p149
      %p151 = scmp.ne.s32.totalorder %s140, %s141
      %p152 = scmp.eq.s32.totalorder %s22, 0
      %p153 = por %p151, %p152
      %p154 = scmp.ne.s32.totalorder %s140, %s141
      %p155 = scmp.eq.s32.totalorder %s23, 1
      %p156 = por %p154, %p155
      %p158 = scmp.ne.s32.totalorder %s141, %s157
      %p159 = scmp.eq.s32.totalorder %s23, 0
      %p160 = por %p158, %p159
      %p161 = scmp.le.s32.totalorder 1, %s17
      %p162 = scmp.lt.s32.totalorder %s17, 3
      %p163 = pnand %p161, %p162
      %p164 = pneg %p163
      // Predicated region
      $region9: #{tpu_custom_call.1} parent=5 // pred_check
        _
      $region10: #{tpu_custom_call.1} parent=5 // pred_check_branch
        %166 = sbr.rel (%p163) target = $region12
      $region11: #{tpu_custom_call.1} parent=5 // pred_region
        %s167 = ssub.s32 %s17, 1
        // Predicated region
        $region13: #{tpu_custom_call.1} parent=11 // pred_check
          %p168 = pneg %p64
        $region14: #{tpu_custom_call.1} parent=11 // pred_check_branch
          %170 = sbr.rel (%p168) target = $region16
        $region15: #{tpu_custom_call.1} parent=11 // pred_region
          _
        $region16: #{tpu_custom_call.1} parent=11 // pred_fallthru
          _
        // Predicated region
        $region17: #{tpu_custom_call.1} parent=11 // pred_check
          %p171 = pneg %p85
        $region18: #{tpu_custom_call.1} parent=11 // pred_check_branch
          %173 = sbr.rel (%p171) target = $region20
        $region19: #{tpu_custom_call.1} parent=11 // pred_region
          _
        $region20: #{tpu_custom_call.1} parent=11 // pred_fallthru
          _
        // Predicated region
        $region21: #{tpu_custom_call.1} parent=11 // pred_check
          %p174 = pneg %p106
        $region22: #{tpu_custom_call.1} parent=11 // pred_check_branch
          %176 = sbr.rel (%p174) target = $region24
        $region23: #{tpu_custom_call.1} parent=11 // pred_region
          _
        $region24: #{tpu_custom_call.1} parent=11 // pred_fallthru
          _
        // Predicated region
        $region25: #{tpu_custom_call.1} parent=11 // pred_check
          %p177 = pneg %p127
        $region26: #{tpu_custom_call.1} parent=11 // pred_check_branch
          %179 = sbr.rel (%p177) target = $region28
        $region27: #{tpu_custom_call.1} parent=11 // pred_region
          _
        $region28: #{tpu_custom_call.1} parent=11 // pred_fallthru
          _
      $region12: #{tpu_custom_call.1} parent=5 // pred_fallthru
        _
      %p180 = scmp.lt.s32.totalorder %s17, 2
      // Predicated region
      $region29: #{tpu_custom_call.1} parent=5 // pred_check
        %p181 = pneg %p180
      $region30: #{tpu_custom_call.1} parent=5 // pred_check_branch
        %183 = sbr.rel (%p181) target = $region32
      $region31: #{tpu_custom_call.1} parent=5 // pred_region
        // Predicated region
        $region33: #{tpu_custom_call.1} parent=31 // pred_check
          %p184 = pneg %p37
        $region34: #{tpu_custom_call.1} parent=31 // pred_check_branch
          %186 = sbr.rel (%p184) target = $region36
        $region35: #{tpu_custom_call.1} parent=31 // pred_region
          %s187 = sand.u32 %s27, 1
          %s188 = scalar_lea.sflag [#allocation3], %s187
          %s189 = sand.u32 %s27, 1
          %s190 = smul.addr %s189, 16
          %s191 = scalar_lea.vmem [#allocation2], %s190
          %s193 = ssub.s32 256, 256
          %194 = vsyncadd %s188, %s193
          %s195 = smul.addr %s17, 2
          %s196 = smul.addr %s195, 128
          %s197 = scalar_lea.hbm %s0, %s196
          %s199 = sshll.u32 %s191, 4
          %s200 = int_to_ptr.vmem [resolvable:$true] %s199
          %202 = dma.hbm_to_vmem [thread:$0]  %s197, 256, %s200, %s188
        $region36: #{tpu_custom_call.1} parent=31 // pred_fallthru
          _
      $region32: #{tpu_custom_call.1} parent=5 // pred_fallthru
        _
      %p203 = scmp.le.s32.totalorder 1, %s17
      %p204 = scmp.lt.s32.totalorder %s17, 3
      %p205 = pnand %p203, %p204
      %p206 = pneg %p205
      // Predicated region
      $region37: #{tpu_custom_call.1} parent=5 // pred_check
        _
      $region38: #{tpu_custom_call.1} parent=5 // pred_check_branch
        %208 = sbr.rel (%p205) target = $region40
      $region39: #{tpu_custom_call.1} parent=5 // pred_region
        %s209 = ssub.s32 %s17, 1
        %s210 = sand.u32 %s30, 1
        %s211 = scalar_lea.sflag [#allocation3], %s210
        %s212 = sand.u32 %s30, 1
        %s213 = smul.addr %s212, 16
        %s214 = scalar_lea.vmem [#allocation2], %s213
        // Predicated region
        $region41: #{tpu_custom_call.1} parent=39 // pred_check
          %p215 = pneg %p43
        $region42: #{tpu_custom_call.1} parent=39 // pred_check_branch
          %217 = sbr.rel (%p215) target = $region44
        $region43: #{tpu_custom_call.1} parent=39 // pred_region
          %218 = dma.done %s211, 256
        $region44: #{tpu_custom_call.1} parent=39 // pred_fallthru
          _
        %s219 = sand.u32 %s30, 1
        %s220 = scalar_lea.sflag [#allocation3], %s219
        %s221 = sand.u32 %s30, 1
        %s222 = smul.addr %s221, 16
        %s223 = scalar_lea.vmem [#allocation2], %s222
        %p224 = pneg %p43
        %p225 = pneg %p40
        %p226 = pneg %p64
        %p227 = pneg %p61
        %p228 = pneg %p85
        %p229 = pneg %p82
        %p230 = pneg %p106
        %p231 = pneg %p103
        %p232 = pneg %p127
        %p233 = pneg %p124
        %p234 = pneg %p153
        %p235 = pneg %p150
        %s236 = sand.u32 %s140, 1
        %s237 = scalar_lea.sflag [#allocation4], %s236
        %s238 = sand.u32 %s140, 1
        %s239 = smul.addr %s238, 16
        %s240 = scalar_lea.vmem [#allocation5], %s239
        %v242 = vlaneseq
        %v243 = vand.u32 %v242, 127
        %v244 = vadd.s32 %v243, 128
        %v245 = vand.u32 %v243, 15
        %v246 = vand.u32 %v244, 15
        %v247 = vld [vmem:[%s214] sm:$0xff]
        %v248 = vld [vmem:[%s214 + $0x8] sm:$0xff]
        %249 = vrot.lane.b32.xlu0 %v247, 17
        %v250 = vpop.permute.xlu0 %249
        %251 = vrot.lane.b32.xlu0 %v248, 17
        %v252 = vpop.permute.xlu0 %251
        %vm253 = vcmp.lt.s32.totalorder %v243, 17
        %v254 = vsel %vm253, %v250, %v252
        %v255 = vsel %vm253, %v252, %v250
        %vm256 = vcmp.ge.s32.totalorder %v243, 16
        %vm257 = vcmp.ge.s32.totalorder %v244, 16
        %vm258 = vcmp.ge.s32.totalorder %v245, 1
        %vm259 = vcmp.ge.s32.totalorder %v246, 1
        %vm260 = vmand %vm256, %vm258
        %vm261 = vmand %vm257, %vm259
        %v262 = vsel %vm260, 1, 0
        %v263 = vsel %vm261, 1, 0
        %vm264 = vcmp.eq.s32.totalorder %v262, 1
        %vm265 = vcmp.eq.s32.totalorder %v263, 1
        %v266 = vsel %vm264, %v255, 0.0
        %v267 = vsel %vm265, %v254, 0.0
        %268 = vrot.lane.b32.xlu0 %v247, 16
        %v269 = vpop.permute.xlu0 %268
        %270 = vrot.lane.b32.xlu0 %v248, 16
        %v271 = vpop.permute.xlu0 %270
        %vm272 = vcmp.lt.s32.totalorder %v243, 16
        %v273 = vsel %vm272, %v269, %v271
        %v274 = vsel %vm272, %v271, %v269
        %v275 = vsel %vm256, 1, 0
        %v276 = vsel %vm257, 1, 0
        %vm277 = vcmp.eq.s32.totalorder %v275, 1
        %vm278 = vcmp.eq.s32.totalorder %v276, 1
        %v279 = vsel %vm277, %v274, 0.0
        %v280 = vsel %vm278, %v273, 0.0
        %281 = vrot.lane.b32.xlu0 %v247, 15
        %v282 = vpop.permute.xlu0 %281
        %283 = vrot.lane.b32.xlu0 %v248, 15
        %v284 = vpop.permute.xlu0 %283
        %vm285 = vcmp.lt.s32.totalorder %v243, 15
        %v286 = vsel %vm285, %v282, %v284
        %v287 = vsel %vm285, %v284, %v282
        %vm288 = vcmp.le.s32.totalorder %v245, 14
        %vm289 = vcmp.le.s32.totalorder %v246, 14
        %vm290 = vmand %vm256, %vm288
        %vm291 = vmand %vm257, %vm289
        %v292 = vsel %vm290, 1, 0
        %v293 = vsel %vm291, 1, 0
        %vm294 = vcmp.eq.s32.totalorder %v292, 1
        %vm295 = vcmp.eq.s32.totalorder %v293, 1
        %v296 = vsel %vm294, %v287, 0.0
        %v297 = vsel %vm295, %v286, 0.0
        %298 = vrot.lane.b32.xlu0 %v247, 1
        %v299 = vpop.permute.xlu0 %298
        %300 = vrot.lane.b32.xlu0 %v248, 1
        %v301 = vpop.permute.xlu0 %300
        %vm302 = vcmp.lt.s32.totalorder %v243, 1
        %v303 = vsel %vm302, %v299, %v301
        %v304 = vsel %vm302, %v301, %v299
        %v305 = vsel %vm258, 1, 0
        %v306 = vsel %vm259, 1, 0
        %vm307 = vcmp.eq.s32.totalorder %v305, 1
        %vm308 = vcmp.eq.s32.totalorder %v306, 1
        %v309 = vsel %vm307, %v304, 0.0
        %v310 = vsel %vm308, %v303, 0.0
        %311 = vrot.lane.b32.xlu0 %v247, 127
        %v312 = vpop.permute.xlu0 %311
        %313 = vrot.lane.b32.xlu0 %v248, 127
        %v314 = vpop.permute.xlu0 %313
        %vm315 = vcmp.lt.s32.totalorder %v243, 127
        %v316 = vsel %vm315, %v312, %v314
        %v317 = vsel %vm315, %v314, %v312
        %v318 = vsel %vm288, 1, 0
        %v319 = vsel %vm289, 1, 0
        %vm320 = vcmp.eq.s32.totalorder %v318, 1
        %vm321 = vcmp.eq.s32.totalorder %v319, 1
        %v322 = vsel %vm320, %v316, 0.0
        %v323 = vsel %vm321, %v317, 0.0
        %324 = vrot.lane.b32.xlu0 %v247, 113
        %v325 = vpop.permute.xlu0 %324
        %326 = vrot.lane.b32.xlu0 %v248, 113
        %v327 = vpop.permute.xlu0 %326
        %vm328 = vcmp.lt.s32.totalorder %v243, 113
        %v329 = vsel %vm328, %v325, %v327
        %v330 = vsel %vm328, %v327, %v325
        %vm331 = vcmp.lt.s32.totalorder %v243, 240
        %vm332 = vcmp.lt.s32.totalorder %v244, 240
        %vm333 = vmand %vm331, %vm258
        %vm334 = vmand %vm332, %vm259
        %v335 = vsel %vm333, 1, 0
        %v336 = vsel %vm334, 1, 0
        %vm337 = vcmp.eq.s32.totalorder %v335, 1
        %vm338 = vcmp.eq.s32.totalorder %v336, 1
        %v339 = vsel %vm337, %v329, 0.0
        %v340 = vsel %vm338, %v330, 0.0
        %341 = vrot.lane.b32.xlu0 %v247, 112
        %v342 = vpop.permute.xlu0 %341
        %343 = vrot.lane.b32.xlu0 %v248, 112
        %v344 = vpop.permute.xlu0 %343
        %vm345 = vcmp.lt.s32.totalorder %v243, 112
        %v346 = vsel %vm345, %v342, %v344
        %v347 = vsel %vm345, %v344, %v342
        %v348 = vsel %vm331, 1, 0
        %v349 = vsel %vm332, 1, 0
        %vm350 = vcmp.eq.s32.totalorder %v348, 1
        %vm351 = vcmp.eq.s32.totalorder %v349, 1
        %v352 = vsel %vm350, %v346, 0.0
        %v353 = vsel %vm351, %v347, 0.0
        %354 = vrot.lane.b32.xlu0 %v247, 111
        %v355 = vpop.permute.xlu0 %354
        %356 = vrot.lane.b32.xlu0 %v248, 111
        %v357 = vpop.permute.xlu0 %356
        %vm358 = vcmp.lt.s32.totalorder %v243, 111
        %v359 = vsel %vm358, %v355, %v357
        %v360 = vsel %vm358, %v357, %v355
        %vm361 = vmand %vm331, %vm288
        %vm362 = vmand %vm332, %vm289
        %v363 = vsel %vm361, 1, 0
        %v364 = vsel %vm362, 1, 0
        %vm365 = vcmp.eq.s32.totalorder %v363, 1
        %vm366 = vcmp.eq.s32.totalorder %v364, 1
        %v367 = vsel %vm365, %v359, 0.0
        %v368 = vsel %vm366, %v360, 0.0
        %v369 = vpack.c.bf16 %v279, %v266
        %v370 = vpack.c.bf16 %v280, %v267
        %v371 = vpack.c.bf16 %v309, %v296
        %v372 = vpack.c.bf16 %v310, %v297
        %v373 = vpack.c.bf16 %v322, %v247
        %v374 = vpack.c.bf16 %v323, %v248
        %v375 = vpack.c.bf16 %v352, %v339
        %v376 = vpack.c.bf16 %v353, %v340
        %v377 = vpack.c.bf16 %v367, %v367
        %v378 = vpack.c.bf16 %v368, %v368
        %v379 = vld [vmem:[%s1] sm:$0xf]
        %v380 = vld [vmem:[%s2] sm:$0xff]
        %382 = vset.pattern.permute.xlu0 0
        %383 = vperm.xlu0 %382, %v380
        %v384 = vpop.permute.xlu0 %383
        %vm386 = vcmask 588800
        %v388 = vsel %vm386, %v379, 0
        %vm390 = vcmask 1043456
        %v392 = vsel %vm390, %v377, 0
        %v395 = vsel %vm390, %v378, 0
        %397 = vmatprep.subr.bf16.mxu0 %v370
        %398 = vmatpush1.bf16.msra.mxu0 %v369
        %399 = vmatprep.subr.bf16.mxu0 %v372
        %400 = vmatpush1.bf16.msra.mxu0 %v371
        %401 = vmatprep.subr.bf16.mxu0 %v374
        %402 = vmatpush1.bf16.msra.mxu0 %v373
        %403 = vmatprep.subr.bf16.mxu0 %v376
        %404 = vmatpush1.bf16.msra.mxu0 %v375
        %405 = vmatprep.subr.bf16.mxu0 %v395
        %406 = vmatpush1.bf16.msra.mxu0 %v392
        %407 = vmatprep.subr.bf16.mxu0 0
        %408 = vmatpush1.bf16.msra.mxu0 0
        %409 = vmatprep.subr.bf16.mxu0 0
        %410 = vmatpush1.bf16.msra.mxu0 0
        %411 = vmatprep.subr.bf16.mxu0 0
        %412 = vmatpush1.bf16.msra.mxu0 0
        %413 = vmatprep.subr.bf16.mxu0 0
        %414 = vmatpush1.bf16.msra.mxu0 0
        %415 = vmatprep.subr.bf16.mxu0 0
        %416 = vmatpush1.bf16.msra.mxu0 0
        %417 = vmatprep.subr.bf16.mxu0 0
        %418 = vmatpush1.bf16.msra.mxu0 0
        %419 = vmatprep.subr.bf16.mxu0 0
        %420 = vmatpush1.bf16.msra.mxu0 0
        %421 = vmatprep.subr.bf16.mxu0 0
        %422 = vmatpush1.bf16.msra.mxu0 0
        %423 = vmatprep.subr.bf16.mxu0 0
        %424 = vmatpush1.bf16.msra.mxu0 0
        %425 = vmatprep.subr.bf16.mxu0 0
        %426 = vmatpush1.bf16.msra.mxu0 0
        %427 = vmatprep.subr.bf16.mxu0 0
        %428 = vmatpush1.bf16.msra.mxu0 0
        %429 = vmatprep.mubr.bf16.mxu0 0
        %430 = vmatmul.mubr.bf16.gmra.mrb[0].mxu0 %v388
        %v431 = vpop.f32.mrb[0].mxu0
        %v432 = vadd.f32 %v384, %v431
        %v433 = vpop.f32.mrb[0].mxu0
        %v434 = vadd.f32 %v384, %v433
        %v435 = vpop.f32.mrb[0].mxu0
        %v436 = vpop.f32.mrb[0].mxu0
        %437 = vdwg.mxu0
        %v438 = vmax.f32 %v432, 0.0
        %v439 = vmax.f32 %v434, 0.0
        %440 = vrot.lane.b32.xlu0 %v438, 17
        %v441 = vpop.permute.xlu0 %440
        %442 = vrot.lane.b32.xlu0 %v439, 17
        %v443 = vpop.permute.xlu0 %442
        %v444 = vsel %vm253, %v441, %v443
        %v445 = vsel %vm253, %v443, %v441
        %v446 = vsel %vm264, %v445, 0.0
        %v447 = vsel %vm265, %v444, 0.0
        %448 = vrot.lane.b32.xlu0 %v438, 16
        %v449 = vpop.permute.xlu0 %448
        %450 = vrot.lane.b32.xlu0 %v439, 16
        %v451 = vpop.permute.xlu0 %450
        %v452 = vsel %vm272, %v449, %v451
        %v453 = vsel %vm272, %v451, %v449
        %v454 = vsel %vm277, %v453, 0.0
        %v455 = vsel %vm278, %v452, 0.0
        %456 = vrot.lane.b32.xlu0 %v438, 15
        %v457 = vpop.permute.xlu0 %456
        %458 = vrot.lane.b32.xlu0 %v439, 15
        %v459 = vpop.permute.xlu0 %458
        %v460 = vsel %vm285, %v457, %v459
        %v461 = vsel %vm285, %v459, %v457
        %v462 = vsel %vm294, %v461, 0.0
        %v463 = vsel %vm295, %v460, 0.0
        %464 = vrot.lane.b32.xlu0 %v438, 1
        %v465 = vpop.permute.xlu0 %464
        %466 = vrot.lane.b32.xlu0 %v439, 1
        %v467 = vpop.permute.xlu0 %466
        %v468 = vsel %vm302, %v465, %v467
        %v469 = vsel %vm302, %v467, %v465
        %v470 = vsel %vm307, %v469, 0.0
        %v471 = vsel %vm308, %v468, 0.0
        %472 = vrot.lane.b32.xlu0 %v438, 127
        %v473 = vpop.permute.xlu0 %472
        %474 = vrot.lane.b32.xlu0 %v439, 127
        %v475 = vpop.permute.xlu0 %474
        %v476 = vsel %vm315, %v473, %v475
        %v477 = vsel %vm315, %v475, %v473
        %v478 = vsel %vm320, %v476, 0.0
        %v479 = vsel %vm321, %v477, 0.0
        %480 = vrot.lane.b32.xlu0 %v438, 113
        %v481 = vpop.permute.xlu0 %480
        %482 = vrot.lane.b32.xlu0 %v439, 113
        %v483 = vpop.permute.xlu0 %482
        %v484 = vsel %vm328, %v481, %v483
        %v485 = vsel %vm328, %v483, %v481
        %v486 = vsel %vm337, %v484, 0.0
        %v487 = vsel %vm338, %v485, 0.0
        %488 = vrot.lane.b32.xlu0 %v438, 112
        %v489 = vpop.permute.xlu0 %488
        %490 = vrot.lane.b32.xlu0 %v439, 112
        %v491 = vpop.permute.xlu0 %490
        %v492 = vsel %vm345, %v489, %v491
        %v493 = vsel %vm345, %v491, %v489
        %v494 = vsel %vm350, %v492, 0.0
        %v495 = vsel %vm351, %v493, 0.0
        %496 = vrot.lane.b32.xlu0 %v438, 111
        %v497 = vpop.permute.xlu0 %496
        %498 = vrot.lane.b32.xlu0 %v439, 111
        %v499 = vpop.permute.xlu0 %498
        %v500 = vsel %vm358, %v497, %v499
        %v501 = vsel %vm358, %v499, %v497
        %v502 = vsel %vm365, %v500, 0.0
        %v503 = vsel %vm366, %v501, 0.0
        %v504 = vpack.c.bf16 %v454, %v446
        %v505 = vpack.c.bf16 %v455, %v447
        %v506 = vpack.c.bf16 %v470, %v462
        %v507 = vpack.c.bf16 %v471, %v463
        %v508 = vpack.c.bf16 %v478, %v438
        %v509 = vpack.c.bf16 %v479, %v439
        %v510 = vpack.c.bf16 %v494, %v486
        %v511 = vpack.c.bf16 %v495, %v487
        %v512 = vpack.c.bf16 %v502, %v502
        %v513 = vpack.c.bf16 %v503, %v503
        %v514 = vld [vmem:[%s3] sm:$0xf]
        %v515 = vld [vmem:[%s4] sm:$0xff]
        %517 = vset.pattern.permute.xlu0 0
        %518 = vperm.xlu0 %517, %v515
        %v519 = vpop.permute.xlu0 %518
        %v522 = vsel %vm386, %v514, 0
        %v525 = vsel %vm390, %v512, 0
        %v528 = vsel %vm390, %v513, 0
        %530 = vmatprep.subr.bf16.mxu0 %v505
        %531 = vmatpush1.bf16.msra.mxu0 %v504
        %532 = vmatprep.subr.bf16.mxu0 %v507
        %533 = vmatpush1.bf16.msra.mxu0 %v506
        %534 = vmatprep.subr.bf16.mxu0 %v509
        %535 = vmatpush1.bf16.msra.mxu0 %v508
        %536 = vmatprep.subr.bf16.mxu0 %v511
        %537 = vmatpush1.bf16.msra.mxu0 %v510
        %538 = vmatprep.subr.bf16.mxu0 %v528
        %539 = vmatpush1.bf16.msra.mxu0 %v525
        %540 = vmatprep.subr.bf16.mxu0 0
        %541 = vmatpush1.bf16.msra.mxu0 0
        %542 = vmatprep.subr.bf16.mxu0 0
        %543 = vmatpush1.bf16.msra.mxu0 0
        %544 = vmatprep.subr.bf16.mxu0 0
        %545 = vmatpush1.bf16.msra.mxu0 0
        %546 = vmatprep.subr.bf16.mxu0 0
        %547 = vmatpush1.bf16.msra.mxu0 0
        %548 = vmatprep.subr.bf16.mxu0 0
        %549 = vmatpush1.bf16.msra.mxu0 0
        %550 = vmatprep.subr.bf16.mxu0 0
        %551 = vmatpush1.bf16.msra.mxu0 0
        %552 = vmatprep.subr.bf16.mxu0 0
        %553 = vmatpush1.bf16.msra.mxu0 0
        %554 = vmatprep.subr.bf16.mxu0 0
        %555 = vmatpush1.bf16.msra.mxu0 0
        %556 = vmatprep.subr.bf16.mxu0 0
        %557 = vmatpush1.bf16.msra.mxu0 0
        %558 = vmatprep.subr.bf16.mxu0 0
        %559 = vmatpush1.bf16.msra.mxu0 0
        %560 = vmatprep.subr.bf16.mxu0 0
        %561 = vmatpush1.bf16.msra.mxu0 0
        %562 = vmatprep.mubr.bf16.mxu0 0
        %563 = vmatmul.mubr.bf16.gmra.mrb[0].mxu0 %v522
        %v564 = vpop.f32.mrb[0].mxu0
        %v565 = vadd.f32 %v519, %v564
        %v566 = vpop.f32.mrb[0].mxu0
        %v567 = vadd.f32 %v519, %v566
        %v568 = vpop.f32.mrb[0].mxu0
        %v569 = vpop.f32.mrb[0].mxu0
        %570 = vdwg.mxu0
        %571 = vst [vmem:[%s240] sm:$0xff] %v565
        %572 = vst [vmem:[%s240 + $0x8] sm:$0xff] %v567
        %s573 = sand.u32 %s140, 1
        %s574 = scalar_lea.sflag [#allocation4], %s573
        %s575 = sand.u32 %s140, 1
        %s576 = smul.addr %s575, 16
        %s577 = scalar_lea.vmem [#allocation5], %s576
        // Predicated region
        $region45: #{tpu_custom_call.1} parent=39 // pred_check
          %p578 = pneg %p150
        $region46: #{tpu_custom_call.1} parent=39 // pred_check_branch
          %580 = sbr.rel (%p578) target = $region48
        $region47: #{tpu_custom_call.1} parent=39 // pred_region
          %s582 = ssub.s32 256, 256
          %583 = vsyncadd %s574, %s582
          %s584 = smul.addr %s22, 2
          %s585 = smul.addr %s584, 128
          %s586 = scalar_lea.hbm %s5, %s585
          %s588 = sshll.u32 %s577, 4
          %s589 = int_to_ptr.vmem [resolvable:$true] %s588
          %591 = dma.vmem_to_hbm [thread:$0]  %s589, 256, %s586, %s574
        $region48: #{tpu_custom_call.1} parent=39 // pred_fallthru
          _
      $region40: #{tpu_custom_call.1} parent=5 // pred_fallthru
        _
      %p592 = scmp.le.s32.totalorder 2, %s17
      // Predicated region
      $region49: #{tpu_custom_call.1} parent=5 // pred_check
        %p593 = pneg %p592
      $region50: #{tpu_custom_call.1} parent=5 // pred_check_branch
        %595 = sbr.rel (%p593) target = $region52
      $region51: #{tpu_custom_call.1} parent=5 // pred_region
        %s596 = ssub.s32 %s17, 2
        // Predicated region
        $region53: #{tpu_custom_call.1} parent=51 // pred_check
          %p597 = pneg %p156
        $region54: #{tpu_custom_call.1} parent=51 // pred_check_branch
          %599 = sbr.rel (%p597) target = $region56
        $region55: #{tpu_custom_call.1} parent=51 // pred_region
          %s600 = sand.u32 %s141, 1
          %s601 = scalar_lea.sflag [#allocation4], %s600
          %s602 = sand.u32 %s141, 1
          %s603 = smul.addr %s602, 16
          %s604 = scalar_lea.vmem [#allocation5], %s603
          %605 = dma.done %s601, 256
        $region56: #{tpu_custom_call.1} parent=51 // pred_fallthru
          _
      $region52: #{tpu_custom_call.1} parent=5 // pred_fallthru
        _
    $region6: #{tpu_custom_call.1} parent=1 // loop_footer
      %s21 = sadd.s32 1, %s17
    $region7: #{tpu_custom_call.1} parent=1 // loop_footer_branch
      %16 = sbr.rel target = $region3
    $region8: #{tpu_custom_call.1} parent=1 // loop_exit
      _
    %606 = vsyncpa [#allocation3], 1
    %s607 = scalar_lea.sflag [#allocation3], 1
    %608 = vsyncpa %s607, 1
    %609 = vsyncpa [#allocation4], 1
    %s610 = scalar_lea.sflag [#allocation4], 1
    %611 = vsyncpa %s610, 1

</llo_original>
